<compile_context>
chip_gen: v7x
topology: tpu7x:2x2x1
jax: 0.10.0
libtpu: 0.0.40
codegen_flags: <defaults>
</compile_context>

<pallas_src>
import functools

import jax
import jax.numpy as jnp
from jax.experimental import pallas as pl
from jax.experimental.pallas import tpu as pltpu


def linear_kernel(xt_ref, w_ref, b_ref, o_ref):
    # xt_ref: (F, TB) VMEM   -- batch on lanes, features on sublanes
    # w_ref : (F, 1)  VMEM   -- weight column (resident across grid steps)
    # b_ref : (1,)    SMEM   -- bias scalar
    # o_ref : (1, TB) VMEM   -- lane-dense output block
    xt = xt_ref[...]                                   # (F, TB)
    w = w_ref[...]                                     # (F, 1)
    # VPU broadcast-multiply + sublane reduce over features (no MXU for N=1).
    acc = jnp.sum(xt * w, axis=0, keepdims=True)       # (1, TB) f32
    o_ref[...] = (acc + b_ref[0]).astype(o_ref.dtype)


@functools.partial(jax.jit, static_argnames=("block_b",))
def linear_regression_forward(x, weight, bias, *, block_b=1024):
    """x: (B, F) f32, weight: (1, F) f32 (torch layout), bias: (1,) f32 -> (B, 1)."""
    B, F = x.shape

    # Lane-dense layout: features on sublanes, batch on the 128-lane axis.
    xt = x.T                                # (F, B)
    wt = weight.reshape(F, 1)               # (F, 1) column for sublane broadcast
    b1 = bias.reshape(1)                    # (1,) scalar, lives in SMEM

    if B <= block_b:
        # Single block equal to the full array dims (valid even if B % 128 != 0).
        tb, b_pad = B, B
    else:
        tb = block_b                        # multiple of 128 -> unmasked stores
        b_pad = tb * pl.cdiv(B, tb)
        if b_pad != B:
            xt = jnp.pad(xt, ((0, 0), (0, b_pad - B)))

    out_t = pl.pallas_call(
        linear_kernel,
        out_shape=jax.ShapeDtypeStruct((1, b_pad), x.dtype),
        grid_spec=pltpu.PrefetchScalarGridSpec(
            num_scalar_prefetch=0,
            grid=(b_pad // tb,),
            in_specs=[
                pl.BlockSpec((F, tb), lambda i: (0, i)),            # streamed X tiles
                pl.BlockSpec((F, 1), lambda i: (0, 0)),             # weight: resident
                pl.BlockSpec(memory_space=pltpu.MemorySpace.SMEM),  # bias scalar
            ],
            out_specs=pl.BlockSpec((1, tb), lambda i: (0, i)),
        ),
        compiler_params=pltpu.CompilerParams(
            dimension_semantics=("parallel",),  # megacore sharding on v7x
        ),
    )(xt, wt, b1)

    # Drop padding and restore the (B, 1) torch-style output shape.
    return out_t[0, :B].reshape(B, 1)


if __name__ == "__main__":
    input_features = 3

    key = jax.random.PRNGKey(0)
    kx, kw, kb = jax.random.split(key, 3)

    # Deterministic synthetic parameters (shapes from nn.Linear(3, 1)).
    weight = jax.random.normal(kw, (1, input_features), dtype=jnp.float32) * 0.1
    bias = jax.random.normal(kb, (1,), dtype=jnp.float32) * 0.1

    # Tiled path: batch spans multiple 512-wide lane-dense blocks.
    batch = 2048
    x = jax.random.normal(kx, (batch, input_features), dtype=jnp.float32)
    out = jax.block_until_ready(
        linear_regression_forward(x, weight, bias, block_b=512))
    ref = x @ weight.T + bias
    assert out.shape == (batch, 1)
    assert jnp.allclose(out, ref, atol=1e-5, rtol=1e-5)

    # Small, non-128-aligned batch: exercises the single full-block fallback path.
    x_small = jax.random.normal(kx, (8, input_features), dtype=jnp.float32)
    out_small = jax.block_until_ready(
        linear_regression_forward(x_small, weight, bias))
    ref_small = x_small @ weight.T + bias
    assert out_small.shape == (8, 1)
    assert jnp.allclose(out_small, ref_small, atol=1e-5, rtol=1e-5)

    print("KERNEL_OK")
</pallas_src>

<mosaic_0001>
module attributes {stable_mosaic.version = 11 : i64} {
  func.func @linear_kernel(%arg0: i32, %arg1: memref<3x512xf32, #tpu.memory_space<vmem>>, %arg2: memref<3x1xf32, #tpu.memory_space<vmem>>, %arg3: memref<1xf32, #tpu.memory_space<smem>>, %arg4: memref<1x512xf32, #tpu.memory_space<vmem>>) attributes {dimension_semantics = [#tpu.dimension_semantics<parallel>], iteration_bounds = array<i64: 4>, scalar_prefetch = 0 : i64, scratch_operands = 0 : i64, tpu.core_type = #tpu.core_type<tc>, window_params = [{transform_indices = @transform_0, window_bounds = array<i64: 3, 512>}, {pipeline_mode = #tpu.pipeline_mode<synchronous>, transform_indices = @transform_1, window_bounds = array<i64: 3, 1>}, {transform_indices = @transform_2, window_bounds = array<i64: 1>}, {transform_indices = @transform_3, window_bounds = array<i64: 1, 512>}]} {
    %c0 = arith.constant 0 : index
    %c0_0 = arith.constant 0 : index
    %0 = vector.load %arg1[%c0, %c0_0] : memref<3x512xf32, #tpu.memory_space<vmem>>, vector<3x512xf32>
    %c0_1 = arith.constant 0 : index
    %c0_2 = arith.constant 0 : index
    %1 = vector.load %arg2[%c0_1, %c0_2] : memref<3x1xf32, #tpu.memory_space<vmem>>, vector<3x1xf32>
    %2 = vector.broadcast %1 : vector<3x1xf32> to vector<3x512xf32>
    %3 = arith.mulf %0, %2 : vector<3x512xf32>
    %cst = arith.constant dense<0.000000e+00> : vector<512xf32>
    %4 = vector.multi_reduction <add>, %3, %cst [0] : vector<3x512xf32> to vector<512xf32>
    %5 = vector.shape_cast %4 : vector<512xf32> to vector<1x512xf32>
    %c0_3 = arith.constant 0 : index
    %6 = memref.load %arg3[%c0_3] : memref<1xf32, #tpu.memory_space<smem>>
    %7 = vector.broadcast %6 : f32 to vector<1x512xf32>
    %8 = arith.addf %5, %7 : vector<1x512xf32>
    %c0_4 = arith.constant 0 : index
    %c0_5 = arith.constant 0 : index
    %9 = vector.load %arg4[%c0_4, %c0_5] : memref<1x512xf32, #tpu.memory_space<vmem>>, vector<1x512xf32>
    tpu.vector_store %arg4[%c0_4, %c0_5], %8 {strides = array<i32>} : memref<1x512xf32, #tpu.memory_space<vmem>>, vector<1x512xf32>,
    return
  }
  func.func @transform_0(%arg0: i32) -> (i32, i32) {
    %c0_i32 = arith.constant 0 : i32
    %c0_i32_0 = arith.constant 0 : i32
    return %c0_i32, %arg0 : i32, i32
  }
  func.func @transform_1(%arg0: i32) -> (i32, i32) {
    %c0_i32 = arith.constant 0 : i32
    %c0_i32_0 = arith.constant 0 : i32
    %c0_i32_1 = arith.constant 0 : i32
    return %c0_i32, %c0_i32_0 : i32, i32
  }
  func.func @transform_2(%arg0: i32) -> i32 {
    %c0_i32 = arith.constant 0 : i32
    %c0_i32_0 = arith.constant 0 : i32
    return %c0_i32 : i32
  }
  func.func @transform_3(%arg0: i32) -> (i32, i32) {
    %c0_i32 = arith.constant 0 : i32
    %c0_i32_0 = arith.constant 0 : i32
    return %c0_i32, %arg0 : i32, i32
  }
}

</mosaic_0001>

<llo_original>
// kernel: linear_regression_forward.1
$region0: #{linear_regression_forward.1}
  #allocation0 [shape = 'u32[]', space=smem, size = 0x4, offset = 0x4, fixed_abs, tag = 'smem constant byte address 0x4 - core index']
  #allocation1 [shape = 'u32[144,128]{1,0:T(1,128)}', space=vmem, size = 0x12000, scoped, tag = 'internal scratch']
  #allocation2 [shape = 'f32[1]{0:T(128)S(6)}', space=smem, size = 0x200, scoped, tag = 'scoped memory for linear_regression_forward.1']
  %s0 = inlined_call_operand.hbm [shape: f32[3,2048], index: 0, kind: input, shape index: {}]
  %s1 = inlined_call_operand.vmem [shape: f32[3,1], index: 1, kind: input, shape index: {}]
  %s2 = inlined_call_operand.<no memory space> [shape: f32[1], index: 2, kind: input, shape index: {}]
  %s3 = inlined_call_operand.hbm [shape: f32[1,2048], index: 3, kind: output, shape index: {}]
  %s4 = sld [smem:[#allocation0]]
  $region49: #{linear_regression_forward.1} parent=0
    _
  %s6 = ssub.s32 1, %s4
  %s7 = scalar_select 0, %s6, %s4
  %8 = sst [smem:[#allocation2]] %s2
  $region1: #{linear_regression_forward.1} parent=0
    #allocation3 [shape = 'u8[16384]{0}', space=vmem, size = 0x4000, scoped, tag = 'input window, operand 0']
    #allocation4 [shape = 's32[2]{0}', space=sflag, size = 0x8, scoped, tag = 'scoped memory for linear_regression_forward.1']
    #allocation5 [shape = 's32[2]{0}', space=sflag, size = 0x8, scoped, tag = 'scoped memory for linear_regression_forward.1']
    #allocation6 [shape = 'u8[4096]{0}', space=vmem, size = 0x1000, scoped, tag = 'output window, operand 0']
    %9 = vsyncpa [#allocation4], 0
    %s10 = scalar_lea.sflag [#allocation4], 1
    %11 = vsyncpa %s10, 0
    %12 = vsyncpa [#allocation5], 0
    %s13 = scalar_lea.sflag [#allocation5], 1
    %14 = vsyncpa %s13, 0
    loop: start=0, step=1, limit=6
    $region2: #{linear_regression_forward.1} parent=1 // loop_pre_header
      _
    $region3: #{linear_regression_forward.1} parent=1 // loop_header
      %s16 = sphi 0, %s20
      %p17 = scmp.ge.s32.totalorder %s16, 6
      %s26 = sphi 0, %s28
      %s29 = sphi 0, %s26
      %s30 = sphi 0, %s29
      %s46 = sphi 0, %s30
      %s50 = sphi 0, %s50
      %s52 = sphi 0, %s50
      %s53 = sphi 0, %s52
      %s67 = sphi 0, %s53
      %s71 = sphi 0, %s71
      %s73 = sphi 0, %s71
      %s74 = sphi 0, %s73
      %s88 = sphi 0, %s74
      %s94 = sphi 0, %s96
      %s97 = sphi 0, %s94
      %s98 = sphi 0, %s97
      %s114 = sphi 0, %s98
    $region4: #{linear_regression_forward.1} parent=1 // loop_header_branch
      %19 = sbr.rel (%p17) target = $region8
    $region5: #{linear_regression_forward.1} parent=1 // loop_body
      %s21 = ssub.s32 %s16, 1
      %s22 = ssub.s32 %s16, 2
      %s23 = sadd.s32 %s16, 1
      %s24 = ssub.s32 %s16, %s23
      %p25 = scmp.eq.s32.totalorder %s24, 0
      %s27 = sadd.s32 %s26, 1
      %s28 = scalar_select %p25, %s26, %s27
      %p31 = pneg %p25
      %p32 = scmp.eq.s32.totalorder %s16, 3
      %p33 = por %p31, %p32
      %p34 = scmp.ne.s32.totalorder %s26, %s29
      %p35 = scmp.eq.s32.totalorder %s16, 0
      %p36 = por %p34, %p35
      %p37 = scmp.ne.s32.totalorder %s26, %s29
      %p38 = scmp.eq.s32.totalorder %s21, 3
      %p39 = por %p37, %p38
      %p40 = scmp.ne.s32.totalorder %s29, %s30
      %p41 = scmp.eq.s32.totalorder %s21, 0
      %p42 = por %p40, %p41
      %p43 = scmp.ne.s32.totalorder %s29, %s30
      %p44 = scmp.eq.s32.totalorder %s22, 3
      %p45 = por %p43, %p44
      %p47 = scmp.ne.s32.totalorder %s30, %s46
      %p48 = scmp.eq.s32.totalorder %s22, 0
      %p49 = por %p47, %p48
      %s51 = sadd.s32 %s50, 1
      %p54 = scmp.eq.s32.totalorder %s16, 3
      %p55 = scmp.ne.s32.totalorder %s50, %s52
      %p56 = scmp.eq.s32.totalorder %s16, 0
      %p57 = por %p55, %p56
      %p58 = scmp.ne.s32.totalorder %s50, %s52
      %p59 = scmp.eq.s32.totalorder %s21, 3
      %p60 = por %p58, %p59
      %p61 = scmp.ne.s32.totalorder %s52, %s53
      %p62 = scmp.eq.s32.totalorder %s21, 0
      %p63 = por %p61, %p62
      %p64 = scmp.ne.s32.totalorder %s52, %s53
      %p65 = scmp.eq.s32.totalorder %s22, 3
      %p66 = por %p64, %p65
      %p68 = scmp.ne.s32.totalorder %s53, %s67
      %p69 = scmp.eq.s32.totalorder %s22, 0
      %p70 = por %p68, %p69
      %s72 = sadd.s32 %s71, 1
      %p75 = scmp.eq.s32.totalorder %s16, 3
      %p76 = scmp.ne.s32.totalorder %s71, %s73
      %p77 = scmp.eq.s32.totalorder %s16, 0
      %p78 = por %p76, %p77
      %p79 = scmp.ne.s32.totalorder %s71, %s73
      %p80 = scmp.eq.s32.totalorder %s21, 3
      %p81 = por %p79, %p80
      %p82 = scmp.ne.s32.totalorder %s73, %s74
      %p83 = scmp.eq.s32.totalorder %s21, 0
      %p84 = por %p82, %p83
      %p85 = scmp.ne.s32.totalorder %s73, %s74
      %p86 = scmp.eq.s32.totalorder %s22, 3
      %p87 = por %p85, %p86
      %p89 = scmp.ne.s32.totalorder %s74, %s88
      %p90 = scmp.eq.s32.totalorder %s22, 0
      %p91 = por %p89, %p90
      %s92 = ssub.s32 %s16, %s23
      %p93 = scmp.eq.s32.totalorder %s92, 0
      %s95 = sadd.s32 %s94, 1
      %s96 = scalar_select %p93, %s94, %s95
      %p99 = pneg %p93
      %p100 = scmp.eq.s32.totalorder %s16, 3
      %p101 = por %p99, %p100
      %p102 = scmp.ne.s32.totalorder %s94, %s97
      %p103 = scmp.eq.s32.totalorder %s16, 0
      %p104 = por %p102, %p103
      %p105 = scmp.ne.s32.totalorder %s94, %s97
      %p106 = scmp.eq.s32.totalorder %s21, 3
      %p107 = por %p105, %p106
      %p108 = scmp.ne.s32.totalorder %s97, %s98
      %p109 = scmp.eq.s32.totalorder %s21, 0
      %p110 = por %p108, %p109
      %p111 = scmp.ne.s32.totalorder %s97, %s98
      %p112 = scmp.eq.s32.totalorder %s22, 3
      %p113 = por %p111, %p112
      %p115 = scmp.ne.s32.totalorder %s98, %s114
      %p116 = scmp.eq.s32.totalorder %s22, 0
      %p117 = por %p115, %p116
      %p118 = scmp.le.s32.totalorder 1, %s16
      %p119 = scmp.lt.s32.totalorder %s16, 5
      %p120 = pnand %p118, %p119
      %p121 = pneg %p120
      // Predicated region
      $region9: #{linear_regression_forward.1} parent=5 // pred_check
        _
      $region10: #{linear_regression_forward.1} parent=5 // pred_check_branch
        %123 = sbr.rel (%p120) target = $region12
      $region11: #{linear_regression_forward.1} parent=5 // pred_region
        %s124 = ssub.s32 %s16, 1
        // Predicated region
        $region13: #{linear_regression_forward.1} parent=11 // pred_check
          %p125 = pneg %p63
        $region14: #{linear_regression_forward.1} parent=11 // pred_check_branch
          %127 = sbr.rel (%p125) target = $region16
        $region15: #{linear_regression_forward.1} parent=11 // pred_region
          _
        $region16: #{linear_regression_forward.1} parent=11 // pred_fallthru
          _
        // Predicated region
        $region17: #{linear_regression_forward.1} parent=11 // pred_check
          %p128 = pneg %p84
        $region18: #{linear_regression_forward.1} parent=11 // pred_check_branch
          %130 = sbr.rel (%p128) target = $region20
        $region19: #{linear_regression_forward.1} parent=11 // pred_region
          _
        $region20: #{linear_regression_forward.1} parent=11 // pred_fallthru
          _
      $region12: #{linear_regression_forward.1} parent=5 // pred_fallthru
        _
      %p131 = scmp.lt.s32.totalorder %s16, 4
      // Predicated region
      $region21: #{linear_regression_forward.1} parent=5 // pred_check
        %p132 = pneg %p131
      $region22: #{linear_regression_forward.1} parent=5 // pred_check_branch
        %134 = sbr.rel (%p132) target = $region24
      $region23: #{linear_regression_forward.1} parent=5 // pred_region
        // Predicated region
        $region25: #{linear_regression_forward.1} parent=23 // pred_check
          %p135 = pneg %p36
        $region26: #{linear_regression_forward.1} parent=23 // pred_check_branch
          %137 = sbr.rel (%p135) target = $region28
        $region27: #{linear_regression_forward.1} parent=23 // pred_region
          %s138 = sand.u32 %s26, 1
          %s139 = scalar_lea.sflag [#allocation4], %s138
          %s140 = sand.u32 %s26, 1
          %s141 = smul.addr %s140, 16
          %s142 = scalar_lea.vmem [#allocation3], %s141
          %s143 = smul.u32 4, %s16
          %s145 = ssub.s32 256, 256
          %146 = vsyncadd %s139, %s145
          %s147 = smul.addr %s143, 64
          %s148 = scalar_lea.hbm %s0, %s147
          %s150 = sshll.u32 %s142, 4
          %s151 = int_to_ptr.vmem [resolvable:$true] %s150
          %153 = dma.hbm_to_vmem [thread:$0]  %s148, 256, %s151, %s139
        $region28: #{linear_regression_forward.1} parent=23 // pred_fallthru
          _
      $region24: #{linear_regression_forward.1} parent=5 // pred_fallthru
        _
      %p154 = scmp.le.s32.totalorder 1, %s16
      %p155 = scmp.lt.s32.totalorder %s16, 5
      %p156 = pnand %p154, %p155
      %p157 = pneg %p156
      // Predicated region
      $region29: #{linear_regression_forward.1} parent=5 // pred_check
        _
      $region30: #{linear_regression_forward.1} parent=5 // pred_check_branch
        %159 = sbr.rel (%p156) target = $region32
      $region31: #{linear_regression_forward.1} parent=5 // pred_region
        %s160 = ssub.s32 %s16, 1
        %s161 = sand.u32 %s29, 1
        %s162 = scalar_lea.sflag [#allocation4], %s161
        %s163 = sand.u32 %s29, 1
        %s164 = smul.addr %s163, 16
        %s165 = scalar_lea.vmem [#allocation3], %s164
        // Predicated region
        $region33: #{linear_regression_forward.1} parent=31 // pred_check
          %p166 = pneg %p42
        $region34: #{linear_regression_forward.1} parent=31 // pred_check_branch
          %168 = sbr.rel (%p166) target = $region36
        $region35: #{linear_regression_forward.1} parent=31 // pred_region
          %169 = dma.done %s162, 256
        $region36: #{linear_regression_forward.1} parent=31 // pred_fallthru
          _
        %s170 = sand.u32 %s29, 1
        %s171 = scalar_lea.sflag [#allocation4], %s170
        %s172 = sand.u32 %s29, 1
        %s173 = smul.addr %s172, 16
        %s174 = scalar_lea.vmem [#allocation3], %s173
        %p175 = pneg %p42
        %p176 = pneg %p39
        %p177 = pneg %p63
        %p178 = pneg %p60
        %p179 = pneg %p84
        %p180 = pneg %p81
        %p181 = pneg %p110
        %p182 = pneg %p107
        %s183 = sand.u32 %s97, 1
        %s184 = scalar_lea.sflag [#allocation5], %s183
        %s185 = sand.u32 %s97, 1
        %s186 = smul.addr %s185, 4
        %s187 = scalar_lea.vmem [#allocation6], %s186
        %s188 = smul.u32 4, %s21
        %s189 = smul.u32 4, %s21
        %v190 = vld [vmem:[%s165] sm:$0x77]
        %v191 = vld [vmem:[%s165 + $0x8] sm:$0x77]
        %v192 = vld [vmem:[%s1] sm:$0x7]
        %194 = vset.pattern.permute.xlu0 0
        %195 = vperm.xlu0 %194, %v192
        %v196 = vpop.permute.xlu0 %195
        %v198 = vunpack.c.l.s4 839922192
        %v199 = vunpack.c.0.s8 %v198
        %v200 = vlaneseq
        %v201 = vshrl.u32 %v200, 7
        %v202 = vsub.s32 %v199, %v201
        %v203 = vrot.slane %v196, %v202
        %v205 = vmul.f32 %v190, %v203
        %v206 = vmul.f32 %v191, %v203
        %v209 = vcombine.high %v205, %v205
        %v210 = vcombine.high %v206, %v206
        %vm213 = vcmask 1042432
        %v214 = vsel %vm213, %v205, 0.0
        %v215 = vrot.slane %v214, 4
        %v216 = vadd.f32 %v214, %v215
        %v217 = vrot.slane %v216, 2
        %v218 = vadd.f32 %v216, %v217
        %v219 = vrot.slane %v218, 1
        %v220 = vadd.f32 %v218, %v219
        %v221 = vsel %vm213, %v209, 0.0
        %v222 = vrot.slane %v221, 4
        %v223 = vadd.f32 %v221, %v222
        %v224 = vrot.slane %v223, 2
        %v225 = vadd.f32 %v223, %v224
        %v226 = vrot.slane %v225, 1
        %v227 = vadd.f32 %v225, %v226
        %v228 = vsel %vm213, %v206, 0.0
        %v229 = vrot.slane %v228, 4
        %v230 = vadd.f32 %v228, %v229
        %v231 = vrot.slane %v230, 2
        %v232 = vadd.f32 %v230, %v231
        %v233 = vrot.slane %v232, 1
        %v234 = vadd.f32 %v232, %v233
        %v235 = vsel %vm213, %v210, 0.0
        %v236 = vrot.slane %v235, 4
        %v237 = vadd.f32 %v235, %v236
        %v238 = vrot.slane %v237, 2
        %v239 = vadd.f32 %v237, %v238
        %v240 = vrot.slane %v239, 1
        %v241 = vadd.f32 %v239, %v240
        %s242 = sld [smem:[#allocation2]]
        %v243 = vstv %s242
        %v244 = vadd.f32 %v220, %v243
        %v245 = vadd.f32 %v227, %v243
        %v246 = vadd.f32 %v234, %v243
        %v247 = vadd.f32 %v241, %v243
        %v252 = vcombine.low %v244, %v245
        %v253 = vcombine.low %v246, %v247
        %v255 = vunpack.c.l.s4 1966171168
        %v256 = vunpack.c.0.s8 %v255
        %v257 = vlaneseq
        %v258 = vshrl.u32 %v257, 7
        %v259 = vsub.s32 %v256, %v258
        %v260 = vrot.slane %v252, %v259
        %v262 = vunpack.c.l.s4 1966171168
        %v263 = vunpack.c.0.s8 %v262
        %v264 = vlaneseq
        %v265 = vshrl.u32 %v264, 7
        %v266 = vsub.s32 %v263, %v265
        %v267 = vrot.slane %v253, %v266
        %v268 = vcombine.low %v260, %v267
        %v270 = vunpack.c.l.s4 1966171168
        %v271 = vunpack.c.0.s8 %v270
        %v272 = vlaneseq
        %v273 = vshrl.u32 %v272, 7
        %v274 = vsub.s32 %v271, %v273
        %v275 = vrot.slane %v268, %v274
        %v277 = vlaneseq
        %vm278 = vcmp.ge.s32.totalorder %v277, 0
        %vm279 = vcmp.lt.s32.totalorder %v277, 512
        %vm280 = vmand %vm278, %vm279
        %281 = vst.msk [vmem:[%s187] sm:$0xf] %vm280, %v275
        %s282 = sand.u32 %s97, 1
        %s283 = scalar_lea.sflag [#allocation5], %s282
        %s284 = sand.u32 %s97, 1
        %s285 = smul.addr %s284, 4
        %s286 = scalar_lea.vmem [#allocation6], %s285
        // Predicated region
        $region37: #{linear_regression_forward.1} parent=31 // pred_check
          %p287 = pneg %p107
        $region38: #{linear_regression_forward.1} parent=31 // pred_check_branch
          %289 = sbr.rel (%p287) target = $region40
        $region39: #{linear_regression_forward.1} parent=31 // pred_region
          %s290 = smul.u32 4, %s21
          %s292 = ssub.s32 64, 64
          %293 = vsyncadd %s283, %s292
          %s294 = smul.addr %s290, 16
          %s295 = scalar_lea.hbm %s3, %s294
          %s297 = sshll.u32 %s286, 4
          %s298 = int_to_ptr.vmem [resolvable:$true] %s297
          %300 = dma.vmem_to_hbm [thread:$0]  %s298, 64, %s295, %s283
        $region40: #{linear_regression_forward.1} parent=31 // pred_fallthru
          _
      $region32: #{linear_regression_forward.1} parent=5 // pred_fallthru
        _
      %p301 = scmp.le.s32.totalorder 2, %s16
      // Predicated region
      $region41: #{linear_regression_forward.1} parent=5 // pred_check
        %p302 = pneg %p301
      $region42: #{linear_regression_forward.1} parent=5 // pred_check_branch
        %304 = sbr.rel (%p302) target = $region44
      $region43: #{linear_regression_forward.1} parent=5 // pred_region
        %s305 = ssub.s32 %s16, 2
        // Predicated region
        $region45: #{linear_regression_forward.1} parent=43 // pred_check
          %p306 = pneg %p113
        $region46: #{linear_regression_forward.1} parent=43 // pred_check_branch
          %308 = sbr.rel (%p306) target = $region48
        $region47: #{linear_regression_forward.1} parent=43 // pred_region
          %s309 = sand.u32 %s98, 1
          %s310 = scalar_lea.sflag [#allocation5], %s309
          %s311 = sand.u32 %s98, 1
          %s312 = smul.addr %s311, 4
          %s313 = scalar_lea.vmem [#allocation6], %s312
          %314 = dma.done %s310, 64
        $region48: #{linear_regression_forward.1} parent=43 // pred_fallthru
          _
      $region44: #{linear_regression_forward.1} parent=5 // pred_fallthru
        _
    $region6: #{linear_regression_forward.1} parent=1 // loop_footer
      %s20 = sadd.s32 1, %s16
    $region7: #{linear_regression_forward.1} parent=1 // loop_footer_branch
      %15 = sbr.rel target = $region3
    $region8: #{linear_regression_forward.1} parent=1 // loop_exit
      _
    %315 = vsyncpa [#allocation4], 1
    %s316 = scalar_lea.sflag [#allocation4], 1
    %317 = vsyncpa %s316, 1
    %318 = vsyncpa [#allocation5], 1
    %s319 = scalar_lea.sflag [#allocation5], 1
    %320 = vsyncpa %s319, 1

</llo_original>
